<compile_context>
chip_gen: v6e
topology: v6e:2x2x1
jax: 0.10.0
libtpu: 0.0.40
codegen_flags: <defaults>
</compile_context>

<pallas_src>
import functools

import jax
import jax.numpy as jnp
from jax.experimental import pallas as pl
from jax.experimental.pallas import tpu as pltpu


def _round_up(x, m):
    return (x + m - 1) // m * m


def _recon_softmax_loss_kernel(emb_ref, cell_ref, mat_ref, pneg_ref, nll_ref):
    # proj_pos = emb_pos @ mat.T : contract the embedding dim of both operands
    # (mat stays (H, D_in); the MXU handles the transposed-RHS contraction).
    proj_pos = jax.lax.dot_general(
        emb_ref[...],
        mat_ref[...],
        dimension_numbers=(((1,), (1,)), ((), ())),
        preferred_element_type=jnp.float32,
    )                                                          # (TN, H) f32

    cell = cell_ref[...].astype(jnp.float32)                   # (TN, H)

    # Positive logit: row-wise dot of proj_pos and cell.
    xp = jnp.sum(proj_pos * cell, axis=-1, keepdims=True)      # (TN, 1)

    # Negative logits: cell @ proj_neg.T  (tiny N = k).
    xn = jax.lax.dot_general(
        cell_ref[...],
        pneg_ref[...],
        dimension_numbers=(((1,), (1,)), ((), ())),
        preferred_element_type=jnp.float32,
    )                                                          # (TN, k)

    # Cross entropy with target class 0 (== positive logit), as a stable
    # log-sum-exp over {xp} ∪ xn without materializing a (TN, k+1) concat.
    m = jnp.maximum(xp, jnp.max(xn, axis=-1, keepdims=True))   # (TN, 1)
    sumexp = jnp.exp(xp - m) + jnp.sum(jnp.exp(xn - m), axis=-1, keepdims=True)
    nll_ref[...] = (m - xp) + jnp.log(sumexp)                  # (TN, 1)


@functools.partial(jax.jit, static_argnames=("tile_rows",))
def reconstruction_softmax_loss(sentences, neg_samples, outside_h, embeddings,
                                mat, *, tile_rows=128):
    """sentences: (B, L) int32, neg_samples: (k,) int32,
    outside_h: (B, T, H) f32, embeddings: (V, D_in) f32, mat: (H, D_in) f32."""
    assert tile_rows % 8 == 0
    B, L = sentences.shape
    k = neg_samples.shape[0]
    H = outside_h.shape[-1]
    D_in = embeddings.shape[-1]
    n = B * L

    # ---- plain-JAX glue: embedding gathers, slicing, tiny negative proj ----
    emb_pos = jnp.take(embeddings, sentences.reshape(-1), axis=0)      # (N, D_in)
    emb_neg = jnp.take(embeddings, neg_samples, axis=0)                # (k, D_in)
    proj_neg = jax.lax.dot_general(                                    # (k, H)
        emb_neg, mat,
        dimension_numbers=(((1,), (1,)), ((), ())),
        preferred_element_type=jnp.float32,
    )
    cell = outside_h[:, :L, :].reshape(n, H).astype(jnp.float32)       # (N, H)
    emb_pos = emb_pos.astype(jnp.float32)
    mat_f = mat.astype(jnp.float32)

    # ---- row tiling (sublane-aligned), pad rows so the grid divides evenly --
    tn = min(tile_rows, _round_up(n, 8))
    n_pad = _round_up(n, tn)
    if n_pad != n:
        pad = n_pad - n
        emb_pos = jnp.pad(emb_pos, ((0, pad), (0, 0)))
        cell = jnp.pad(cell, ((0, pad), (0, 0)))
    grid = (n_pad // tn,)

    flops = 2 * n_pad * D_in * H + 2 * n_pad * H * k + 2 * n_pad * H
    transcendentals = n_pad * (k + 2)
    bytes_accessed = 4 * (n_pad * (D_in + H + 1) + H * D_in + k * H)

    nll = pl.pallas_call(
        _recon_softmax_loss_kernel,
        out_shape=jax.ShapeDtypeStruct((n_pad, 1), jnp.float32),
        grid_spec=pltpu.PrefetchScalarGridSpec(
            num_scalar_prefetch=0,
            grid=grid,
            in_specs=[
                pl.BlockSpec((tn, D_in), lambda i: (i, 0)),   # emb_pos tile
                pl.BlockSpec((tn, H), lambda i: (i, 0)),      # cell tile
                pl.BlockSpec((H, D_in), lambda i: (0, 0)),    # mat (resident)
                pl.BlockSpec((k, H), lambda i: (0, 0)),       # proj_neg (resident)
            ],
            out_specs=pl.BlockSpec((tn, 1), lambda i: (i, 0)),  # per-row NLL
        ),
        compiler_params=pltpu.CompilerParams(
            dimension_semantics=("parallel",),
            vmem_limit_bytes=32 * 1024 * 1024,
        ),
        cost_estimate=pl.CostEstimate(
            flops=flops,
            transcendentals=transcendentals,
            bytes_accessed=bytes_accessed,
        ),
    )(emb_pos, cell, mat_f, proj_neg)

    # Mean over the valid rows only (padded rows are sliced away).
    return jnp.sum(nll[:n, 0]) / n


def _reference_loss(sentences, neg_samples, outside_h, embeddings, mat):
    """Pure-JAX mirror of the PyTorch forward."""
    B, L = sentences.shape
    emb_pos = embeddings[sentences]                    # (B, L, D_in)
    emb_neg = embeddings[neg_samples][None]            # (1, k, D_in)
    cell = outside_h[:, :L].reshape(B, L, 1, -1)       # (B, L, 1, H)
    proj_pos = jnp.matmul(emb_pos, mat.T)              # (B, L, H)
    proj_neg = jnp.matmul(emb_neg, mat.T)              # (1, k, H)
    xp = jnp.einsum("abc,abxc->abx", proj_pos, cell)   # (B, L, 1)
    xn = jnp.einsum("zec,abxc->abe", proj_neg, cell)   # (B, L, k)
    score = jnp.concatenate([xp, xn], axis=2)          # (B, L, k+1)
    logits = score.reshape(B * L, -1)
    logp = jax.nn.log_softmax(logits, axis=-1)
    return -jnp.mean(logp[:, 0])                       # target class is 0


if __name__ == "__main__":
    key = jax.random.PRNGKey(0)
    k_emb, k_mat, k_h, k_sent, k_ns = jax.random.split(key, 5)

    batch_size = 2
    length = 8
    total_len = 12        # diora.outside_h may be longer than `length`
    input_size = 32       # embedding dim (D_in)
    size = 64             # diora outside hidden size (H)
    vocab = 100
    n_neg = 3             # k_neg negative samples

    embeddings = 0.5 * jax.random.normal(k_emb, (vocab, input_size), jnp.float32)
    mat = jax.random.normal(k_mat, (size, input_size), jnp.float32)
    outside_h = 0.5 * jax.random.normal(
        k_h, (batch_size, total_len, size), jnp.float32)
    sentences = jax.random.randint(
        k_sent, (batch_size, length), 0, vocab, dtype=jnp.int32)
    neg_samples = jax.random.randint(
        k_ns, (n_neg,), 0, vocab, dtype=jnp.int32)

    # tile_rows=8 exercises a multi-step "parallel" row grid at toy size.
    loss = reconstruction_softmax_loss(
        sentences, neg_samples, outside_h, embeddings, mat, tile_rows=8)
    loss = jax.block_until_ready(loss)

    ref = _reference_loss(sentences, neg_samples, outside_h, embeddings, mat)
    assert jnp.allclose(loss, ref, rtol=1e-4, atol=1e-4), (loss, ref)

    print("KERNEL_OK")
</pallas_src>

<mosaic_0001>
module attributes {stable_mosaic.version = 11 : i64} {
  func.func @_recon_softmax_loss_kernel(%arg0: i32, %arg1: memref<8x32xf32, #tpu.memory_space<vmem>>, %arg2: memref<8x64xf32, #tpu.memory_space<vmem>>, %arg3: memref<64x32xf32, #tpu.memory_space<vmem>>, %arg4: memref<3x64xf32, #tpu.memory_space<vmem>>, %arg5: memref<8x1xf32, #tpu.memory_space<vmem>>) attributes {dimension_semantics = [#tpu.dimension_semantics<parallel>], iteration_bounds = array<i64: 2>, scalar_prefetch = 0 : i64, scratch_operands = 0 : i64, tpu.core_type = #tpu.core_type<tc>, window_params = [{transform_indices = @transform_0, window_bounds = array<i64: 8, 32>}, {transform_indices = @transform_1, window_bounds = array<i64: 8, 64>}, {pipeline_mode = #tpu.pipeline_mode<synchronous>, transform_indices = @transform_2, window_bounds = array<i64: 64, 32>}, {pipeline_mode = #tpu.pipeline_mode<synchronous>, transform_indices = @transform_3, window_bounds = array<i64: 3, 64>}, {transform_indices = @transform_4, window_bounds = array<i64: 8, 1>}]} {
    %c0 = arith.constant 0 : index
    %c0_0 = arith.constant 0 : index
    %0 = vector.load %arg1[%c0, %c0_0] : memref<8x32xf32, #tpu.memory_space<vmem>>, vector<8x32xf32>
    %c0_1 = arith.constant 0 : index
    %c0_2 = arith.constant 0 : index
    %1 = vector.load %arg3[%c0_1, %c0_2] : memref<64x32xf32, #tpu.memory_space<vmem>>, vector<64x32xf32>
    %cst = arith.constant dense<0.000000e+00> : vector<8x64xf32>
    %2 = tpu.matmul %0, %1, %cst {dimension_numbers = #tpu.dot_dimension_numbers<[1], [1], [0], [0], [0, 0, 1, 0], [], []>} : vector<8x32xf32>, vector<64x32xf32>, vector<8x64xf32> -> vector<8x64xf32>
    %c0_3 = arith.constant 0 : index
    %c0_4 = arith.constant 0 : index
    %3 = vector.load %arg2[%c0_3, %c0_4] : memref<8x64xf32, #tpu.memory_space<vmem>>, vector<8x64xf32>
    %4 = arith.mulf %2, %3 : vector<8x64xf32>
    %cst_5 = arith.constant dense<0.000000e+00> : vector<8xf32>
    %5 = vector.multi_reduction <add>, %4, %cst_5 [1] : vector<8x64xf32> to vector<8xf32>
    %6 = vector.shape_cast %5 : vector<8xf32> to vector<8x1xf32>
    %c0_6 = arith.constant 0 : index
    %c0_7 = arith.constant 0 : index
    %7 = vector.load %arg2[%c0_6, %c0_7] : memref<8x64xf32, #tpu.memory_space<vmem>>, vector<8x64xf32>
    %c0_8 = arith.constant 0 : index
    %c0_9 = arith.constant 0 : index
    %8 = vector.load %arg4[%c0_8, %c0_9] : memref<3x64xf32, #tpu.memory_space<vmem>>, vector<3x64xf32>
    %cst_10 = arith.constant dense<0.000000e+00> : vector<8x3xf32>
    %9 = tpu.matmul %7, %8, %cst_10 {dimension_numbers = #tpu.dot_dimension_numbers<[1], [1], [0], [0], [0, 0, 1, 0], [], []>} : vector<8x64xf32>, vector<3x64xf32>, vector<8x3xf32> -> vector<8x3xf32>
    %cst_11 = arith.constant dense<0xFF800000> : vector<8xf32>
    %10 = vector.multi_reduction <maximumf>, %9, %cst_11 [1] : vector<8x3xf32> to vector<8xf32>
    %11 = vector.shape_cast %10 : vector<8xf32> to vector<8x1xf32>
    %12 = arith.maximumf %6, %11 : vector<8x1xf32>
    %13 = arith.subf %6, %12 : vector<8x1xf32>
    %14 = math.exp %13 : vector<8x1xf32>
    %15 = vector.broadcast %12 : vector<8x1xf32> to vector<8x3xf32>
    %16 = arith.subf %9, %15 : vector<8x3xf32>
    %17 = math.exp %16 : vector<8x3xf32>
    %cst_12 = arith.constant dense<0.000000e+00> : vector<8xf32>
    %18 = vector.multi_reduction <add>, %17, %cst_12 [1] : vector<8x3xf32> to vector<8xf32>
    %19 = vector.shape_cast %18 : vector<8xf32> to vector<8x1xf32>
    %20 = arith.addf %14, %19 : vector<8x1xf32>
    %21 = arith.subf %12, %6 : vector<8x1xf32>
    %22 = math.log %20 : vector<8x1xf32>
    %23 = arith.addf %21, %22 : vector<8x1xf32>
    %c0_13 = arith.constant 0 : index
    %c0_14 = arith.constant 0 : index
    %24 = vector.load %arg5[%c0_13, %c0_14] : memref<8x1xf32, #tpu.memory_space<vmem>>, vector<8x1xf32>
    tpu.vector_store %arg5[%c0_13, %c0_14], %23 {strides = array<i32>} : memref<8x1xf32, #tpu.memory_space<vmem>>, vector<8x1xf32>,
    return
  }
  func.func @transform_0(%arg0: i32) -> (i32, i32) {
    %c0_i32 = arith.constant 0 : i32
    %c0_i32_0 = arith.constant 0 : i32
    return %arg0, %c0_i32 : i32, i32
  }
  func.func @transform_1(%arg0: i32) -> (i32, i32) {
    %c0_i32 = arith.constant 0 : i32
    %c0_i32_0 = arith.constant 0 : i32
    return %arg0, %c0_i32 : i32, i32
  }
  func.func @transform_2(%arg0: i32) -> (i32, i32) {
    %c0_i32 = arith.constant 0 : i32
    %c0_i32_0 = arith.constant 0 : i32
    %c0_i32_1 = arith.constant 0 : i32
    return %c0_i32, %c0_i32_0 : i32, i32
  }
  func.func @transform_3(%arg0: i32) -> (i32, i32) {
    %c0_i32 = arith.constant 0 : i32
    %c0_i32_0 = arith.constant 0 : i32
    %c0_i32_1 = arith.constant 0 : i32
    return %c0_i32, %c0_i32_0 : i32, i32
  }
  func.func @transform_4(%arg0: i32) -> (i32, i32) {
    %c0_i32 = arith.constant 0 : i32
    %c0_i32_0 = arith.constant 0 : i32
    return %arg0, %c0_i32 : i32, i32
  }
}

</mosaic_0001>

<llo_original>
// kernel: reconstruction_softmax_loss.1
$region0: #{reconstruction_softmax_loss.1}
  #allocation0 [shape = 'u32[]', space=smem, size = 0x4, offset = 0x4, fixed_abs, tag = 'smem constant byte address 0x4 - core index']
  #allocation1 [shape = 'u32[144,128]{1,0:T(1,128)}', space=vmem, size = 0x12000, scoped, tag = 'internal scratch']
  %s0 = inlined_call_operand.vmem [shape: f32[16,32], index: 0, kind: input, shape index: {}]
  %s1 = inlined_call_operand.vmem [shape: f32[16,64], index: 1, kind: input, shape index: {}]
  %s2 = inlined_call_operand.vmem [shape: f32[64,32], index: 2, kind: input, shape index: {}]
  %s3 = inlined_call_operand.vmem [shape: f32[3,64], index: 3, kind: input, shape index: {}]
  %s4 = inlined_call_operand.vmem [shape: f32[16,1], index: 4, kind: output, shape index: {}]
  %s5 = sld [smem:[#allocation0]]
  $region49: #{reconstruction_softmax_loss.1} parent=0
    _
  %s7 = ssub.s32 1, %s5
  %s8 = scalar_select 0, %s7, %s5
  loop: start=0, step=1, limit=4
  $region2: #{reconstruction_softmax_loss.1} parent=0 // loop_pre_header
    _
  $region3: #{reconstruction_softmax_loss.1} parent=0 // loop_header
    %s10 = sphi 0, %s14
    %p11 = scmp.ge.s32.totalorder %s10, 4
    %s20 = sphi 0, %s22
    %s23 = sphi 0, %s20
    %s24 = sphi 0, %s23
    %s40 = sphi 0, %s24
    %s46 = sphi 0, %s48
    %s49 = sphi 0, %s46
    %s50 = sphi 0, %s49
    %s66 = sphi 0, %s50
    %s70 = sphi 0, %s70
    %s72 = sphi 0, %s70
    %s73 = sphi 0, %s72
    %s87 = sphi 0, %s73
    %s91 = sphi 0, %s91
    %s93 = sphi 0, %s91
    %s94 = sphi 0, %s93
    %s108 = sphi 0, %s94
    %s114 = sphi 0, %s116
    %s117 = sphi 0, %s114
    %s118 = sphi 0, %s117
    %s134 = sphi 0, %s118
  $region4: #{reconstruction_softmax_loss.1} parent=0 // loop_header_branch
    %13 = sbr.rel (%p11) target = $region8
  $region5: #{reconstruction_softmax_loss.1} parent=0 // loop_body
    %s15 = ssub.s32 %s10, 1
    %s16 = ssub.s32 %s10, 2
    %s17 = sadd.s32 %s10, 1
    %s18 = ssub.s32 %s10, %s17
    %p19 = scmp.eq.s32.totalorder %s18, 0
    %s21 = sadd.s32 %s20, 1
    %s22 = scalar_select %p19, %s20, %s21
    %p25 = pneg %p19
    %p26 = scmp.eq.s32.totalorder %s10, 1
    %p27 = por %p25, %p26
    %p28 = scmp.ne.s32.totalorder %s20, %s23
    %p29 = scmp.eq.s32.totalorder %s10, 0
    %p30 = por %p28, %p29
    %p31 = scmp.ne.s32.totalorder %s20, %s23
    %p32 = scmp.eq.s32.totalorder %s15, 1
    %p33 = por %p31, %p32
    %p34 = scmp.ne.s32.totalorder %s23, %s24
    %p35 = scmp.eq.s32.totalorder %s15, 0
    %p36 = por %p34, %p35
    %p37 = scmp.ne.s32.totalorder %s23, %s24
    %p38 = scmp.eq.s32.totalorder %s16, 1
    %p39 = por %p37, %p38
    %p41 = scmp.ne.s32.totalorder %s24, %s40
    %p42 = scmp.eq.s32.totalorder %s16, 0
    %p43 = por %p41, %p42
    %s44 = ssub.s32 %s10, %s17
    %p45 = scmp.eq.s32.totalorder %s44, 0
    %s47 = sadd.s32 %s46, 1
    %s48 = scalar_select %p45, %s46, %s47
    %p51 = pneg %p45
    %p52 = scmp.eq.s32.totalorder %s10, 1
    %p53 = por %p51, %p52
    %p54 = scmp.ne.s32.totalorder %s46, %s49
    %p55 = scmp.eq.s32.totalorder %s10, 0
    %p56 = por %p54, %p55
    %p57 = scmp.ne.s32.totalorder %s46, %s49
    %p58 = scmp.eq.s32.totalorder %s15, 1
    %p59 = por %p57, %p58
    %p60 = scmp.ne.s32.totalorder %s49, %s50
    %p61 = scmp.eq.s32.totalorder %s15, 0
    %p62 = por %p60, %p61
    %p63 = scmp.ne.s32.totalorder %s49, %s50
    %p64 = scmp.eq.s32.totalorder %s16, 1
    %p65 = por %p63, %p64
    %p67 = scmp.ne.s32.totalorder %s50, %s66
    %p68 = scmp.eq.s32.totalorder %s16, 0
    %p69 = por %p67, %p68
    %s71 = sadd.s32 %s70, 1
    %p74 = scmp.eq.s32.totalorder %s10, 1
    %p75 = scmp.ne.s32.totalorder %s70, %s72
    %p76 = scmp.eq.s32.totalorder %s10, 0
    %p77 = por %p75, %p76
    %p78 = scmp.ne.s32.totalorder %s70, %s72
    %p79 = scmp.eq.s32.totalorder %s15, 1
    %p80 = por %p78, %p79
    %p81 = scmp.ne.s32.totalorder %s72, %s73
    %p82 = scmp.eq.s32.totalorder %s15, 0
    %p83 = por %p81, %p82
    %p84 = scmp.ne.s32.totalorder %s72, %s73
    %p85 = scmp.eq.s32.totalorder %s16, 1
    %p86 = por %p84, %p85
    %p88 = scmp.ne.s32.totalorder %s73, %s87
    %p89 = scmp.eq.s32.totalorder %s16, 0
    %p90 = por %p88, %p89
    %s92 = sadd.s32 %s91, 1
    %p95 = scmp.eq.s32.totalorder %s10, 1
    %p96 = scmp.ne.s32.totalorder %s91, %s93
    %p97 = scmp.eq.s32.totalorder %s10, 0
    %p98 = por %p96, %p97
    %p99 = scmp.ne.s32.totalorder %s91, %s93
    %p100 = scmp.eq.s32.totalorder %s15, 1
    %p101 = por %p99, %p100
    %p102 = scmp.ne.s32.totalorder %s93, %s94
    %p103 = scmp.eq.s32.totalorder %s15, 0
    %p104 = por %p102, %p103
    %p105 = scmp.ne.s32.totalorder %s93, %s94
    %p106 = scmp.eq.s32.totalorder %s16, 1
    %p107 = por %p105, %p106
    %p109 = scmp.ne.s32.totalorder %s94, %s108
    %p110 = scmp.eq.s32.totalorder %s16, 0
    %p111 = por %p109, %p110
    %s112 = ssub.s32 %s10, %s17
    %p113 = scmp.eq.s32.totalorder %s112, 0
    %s115 = sadd.s32 %s114, 1
    %s116 = scalar_select %p113, %s114, %s115
    %p119 = pneg %p113
    %p120 = scmp.eq.s32.totalorder %s10, 1
    %p121 = por %p119, %p120
    %p122 = scmp.ne.s32.totalorder %s114, %s117
    %p123 = scmp.eq.s32.totalorder %s10, 0
    %p124 = por %p122, %p123
    %p125 = scmp.ne.s32.totalorder %s114, %s117
    %p126 = scmp.eq.s32.totalorder %s15, 1
    %p127 = por %p125, %p126
    %p128 = scmp.ne.s32.totalorder %s117, %s118
    %p129 = scmp.eq.s32.totalorder %s15, 0
    %p130 = por %p128, %p129
    %p131 = scmp.ne.s32.totalorder %s117, %s118
    %p132 = scmp.eq.s32.totalorder %s16, 1
    %p133 = por %p131, %p132
    %p135 = scmp.ne.s32.totalorder %s118, %s134
    %p136 = scmp.eq.s32.totalorder %s16, 0
    %p137 = por %p135, %p136
    %p138 = scmp.le.s32.totalorder 1, %s10
    %p139 = scmp.lt.s32.totalorder %s10, 3
    %p140 = pnand %p138, %p139
    %p141 = pneg %p140
    // Predicated region
    $region9: #{reconstruction_softmax_loss.1} parent=5 // pred_check
      _
    $region10: #{reconstruction_softmax_loss.1} parent=5 // pred_check_branch
      %143 = sbr.rel (%p140) target = $region12
    $region11: #{reconstruction_softmax_loss.1} parent=5 // pred_region
      %s144 = ssub.s32 %s10, 1
      // Predicated region
      $region13: #{reconstruction_softmax_loss.1} parent=11 // pred_check
        %p145 = pneg %p83
      $region14: #{reconstruction_softmax_loss.1} parent=11 // pred_check_branch
        %147 = sbr.rel (%p145) target = $region16
      $region15: #{reconstruction_softmax_loss.1} parent=11 // pred_region
        _
      $region16: #{reconstruction_softmax_loss.1} parent=11 // pred_fallthru
        _
      // Predicated region
      $region17: #{reconstruction_softmax_loss.1} parent=11 // pred_check
        %p148 = pneg %p104
      $region18: #{reconstruction_softmax_loss.1} parent=11 // pred_check_branch
        %150 = sbr.rel (%p148) target = $region20
      $region19: #{reconstruction_softmax_loss.1} parent=11 // pred_region
        _
      $region20: #{reconstruction_softmax_loss.1} parent=11 // pred_fallthru
        _
    $region12: #{reconstruction_softmax_loss.1} parent=5 // pred_fallthru
      _
    %p151 = scmp.lt.s32.totalorder %s10, 2
    // Predicated region
    $region21: #{reconstruction_softmax_loss.1} parent=5 // pred_check
      %p152 = pneg %p151
    $region22: #{reconstruction_softmax_loss.1} parent=5 // pred_check_branch
      %154 = sbr.rel (%p152) target = $region24
    $region23: #{reconstruction_softmax_loss.1} parent=5 // pred_region
      // Predicated region
      $region25: #{reconstruction_softmax_loss.1} parent=23 // pred_check
        %p155 = pneg %p30
      $region26: #{reconstruction_softmax_loss.1} parent=23 // pred_check_branch
        %157 = sbr.rel (%p155) target = $region28
      $region27: #{reconstruction_softmax_loss.1} parent=23 // pred_region
        %p158 = scmp.lt.s32.totalorder %s10, 1
        %s159 = scalar_select %p158, %s10, 1
        %s160 = smul.addr %s159, 8
        %s161 = scalar_lea.vmem %s0, %s160
      $region28: #{reconstruction_softmax_loss.1} parent=23 // pred_fallthru
        _
      // Predicated region
      $region29: #{reconstruction_softmax_loss.1} parent=23 // pred_check
        %p162 = pneg %p56
      $region30: #{reconstruction_softmax_loss.1} parent=23 // pred_check_branch
        %164 = sbr.rel (%p162) target = $region32
      $region31: #{reconstruction_softmax_loss.1} parent=23 // pred_region
        %p165 = scmp.lt.s32.totalorder %s10, 1
        %s166 = scalar_select %p165, %s10, 1
        %s167 = smul.addr %s166, 8
        %s168 = scalar_lea.vmem %s1, %s167
      $region32: #{reconstruction_softmax_loss.1} parent=23 // pred_fallthru
        _
    $region24: #{reconstruction_softmax_loss.1} parent=5 // pred_fallthru
      _
    %p169 = scmp.le.s32.totalorder 1, %s10
    %p170 = scmp.lt.s32.totalorder %s10, 3
    %p171 = pnand %p169, %p170
    %p172 = pneg %p171
    // Predicated region
    $region33: #{reconstruction_softmax_loss.1} parent=5 // pred_check
      _
    $region34: #{reconstruction_softmax_loss.1} parent=5 // pred_check_branch
      %174 = sbr.rel (%p171) target = $region36
    $region35: #{reconstruction_softmax_loss.1} parent=5 // pred_region
      %s175 = ssub.s32 %s10, 1
      %p176 = scmp.lt.s32.totalorder %s15, 1
      %s177 = scalar_select %p176, %s15, 1
      %s178 = smul.addr %s177, 8
      %s179 = scalar_lea.vmem %s0, %s178
      %p180 = pneg %p36
      %p181 = pneg %p33
      %p182 = scmp.lt.s32.totalorder %s15, 1
      %s183 = scalar_select %p182, %s15, 1
      %s184 = smul.addr %s183, 8
      %s185 = scalar_lea.vmem %s1, %s184
      %p186 = pneg %p62
      %p187 = pneg %p59
      %p188 = pneg %p83
      %p189 = pneg %p80
      %p190 = pneg %p104
      %p191 = pneg %p101
      %p192 = pneg %p130
      %p193 = pneg %p127
      %p194 = scmp.lt.s32.totalorder %s15, 1
      %s195 = scalar_select %p194, %s15, 1
      %s196 = smul.addr %s195, 8
      %s197 = scalar_lea.vmem %s4, %s196
      %p198 = scmp.lt.s32.totalorder %s15, 1
      %s199 = scalar_select %p198, %s15, 1
      %s200 = smul.addr %s199, 8
      %s201 = scalar_lea.vmem %s0, %s200
      %p202 = scmp.lt.s32.totalorder %s15, 1
      %s203 = scalar_select %p202, %s15, 1
      %s204 = smul.addr %s203, 8
      %s205 = scalar_lea.vmem %s1, %s204
      %p206 = scmp.lt.s32.totalorder %s15, 1
      %s207 = scalar_select %p206, %s15, 1
      %s208 = smul.addr %s207, 8
      %s209 = scalar_lea.vmem %s4, %s208
      %v210 = vld [vmem:[%s201] sm:$0xff]
      %v211 = vld [vmem:[%s2] sm:$0xff]
      %v212 = vld [vmem:[%s2 + $0x8] sm:$0xff]
      %v213 = vld [vmem:[%s2 + $0x10] sm:$0xff]
      %v214 = vld [vmem:[%s2 + $0x18] sm:$0xff]
      %v215 = vld [vmem:[%s2 + $0x20] sm:$0xff]
      %v216 = vld [vmem:[%s2 + $0x28] sm:$0xff]
      %v217 = vld [vmem:[%s2 + $0x30] sm:$0xff]
      %v218 = vld [vmem:[%s2 + $0x38] sm:$0xff]
      %vm219 = vcmask 261120
      %v221 = vsel %vm219, %v210, 0
      %v224 = vsel %vm219, %v211, 0
      %v227 = vsel %vm219, %v212, 0
      %v230 = vsel %vm219, %v213, 0
      %v233 = vsel %vm219, %v214, 0
      %v236 = vsel %vm219, %v215, 0
      %v239 = vsel %vm219, %v216, 0
      %v242 = vsel %vm219, %v217, 0
      %v245 = vsel %vm219, %v218, 0
      %247 = vmatprep.subr.mxu0 0.0
      %248 = vmatpush1.xpose.msra.mxu0 0.0
      %249 = vmatprep.subr.mxu0 0.0
      %250 = vmatpush1.xpose.msra.mxu0 0.0
      %251 = vmatprep.subr.mxu0 0.0
      %252 = vmatpush1.xpose.msra.mxu0 0.0
      %253 = vmatprep.subr.mxu0 0.0
      %254 = vmatpush1.xpose.msra.mxu0 0.0
      %255 = vmatprep.subr.mxu0 0.0
      %256 = vmatpush1.xpose.msra.mxu0 0.0
      %257 = vmatprep.subr.mxu0 0.0
      %258 = vmatpush1.xpose.msra.mxu0 0.0
      %259 = vmatprep.subr.mxu0 0.0
      %260 = vmatpush1.xpose.msra.mxu0 0.0
      %261 = vmatprep.subr.mxu0 0.0
      %262 = vmatpush1.xpose.msra.mxu0 0.0
      %263 = vmatprep.subr.mxu0 0.0
      %264 = vmatpush1.xpose.msra.mxu0 %v245
      %265 = vmatprep.subr.mxu0 0.0
      %266 = vmatpush1.xpose.msra.mxu0 %v242
      %267 = vmatprep.subr.mxu0 0.0
      %268 = vmatpush1.xpose.msra.mxu0 %v239
      %269 = vmatprep.subr.mxu0 0.0
      %270 = vmatpush1.xpose.msra.mxu0 %v236
      %271 = vmatprep.subr.mxu0 0.0
      %272 = vmatpush1.xpose.msra.mxu0 %v233
      %273 = vmatprep.subr.mxu0 0.0
      %274 = vmatpush1.xpose.msra.mxu0 %v230
      %275 = vmatprep.subr.mxu0 0.0
      %276 = vmatpush1.xpose.msra.mxu0 %v227
      %277 = vmatprep.subr.mxu0 0.0
      %278 = vmatpush1.xpose.msra.mxu0 %v224
      %279 = vmatprep.subr.mxu0 0.0
      %280 = vmatpush2.xpose.msra.mxu0 0.0
      %281 = vmatprep.subr.mxu0 0.0
      %282 = vmatpush2.xpose.msra.mxu0 0.0
      %283 = vmatprep.subr.mxu0 0.0
      %284 = vmatpush2.xpose.msra.mxu0 0.0
      %285 = vmatprep.subr.mxu0 0.0
      %286 = vmatpush2.xpose.msra.mxu0 0.0
      %287 = vmatprep.subr.mxu0 0.0
      %288 = vmatpush2.xpose.msra.mxu0 0.0
      %289 = vmatprep.subr.mxu0 0.0
      %290 = vmatpush2.xpose.msra.mxu0 0.0
      %291 = vmatprep.subr.mxu0 0.0
      %292 = vmatpush2.xpose.msra.mxu0 0.0
      %293 = vmatprep.subr.mxu0 0.0
      %294 = vmatpush2.xpose.msra.mxu0 0.0
      %295 = vmatprep.subr.mxu0 0.0
      %296 = vmatpush2.xpose.msra.mxu0 0.0
      %297 = vmatprep.subr.mxu0 0.0
      %298 = vmatpush2.xpose.msra.mxu0 0.0
      %299 = vmatprep.subr.mxu0 0.0
      %300 = vmatpush2.xpose.msra.mxu0 0.0
      %301 = vmatprep.subr.mxu0 0.0
      %302 = vmatpush2.xpose.msra.mxu0 0.0
      %303 = vmatprep.subr.mxu0 0.0
      %304 = vmatpush2.xpose.msra.mxu0 0.0
      %305 = vmatprep.subr.mxu0 0.0
      %306 = vmatpush2.xpose.msra.mxu0 0.0
      %307 = vmatprep.subr.mxu0 0.0
      %308 = vmatpush2.xpose.msra.mxu0 0.0
      %309 = vmatprep.subr.mxu0 0.0
      %310 = vmatpush2.xpose.msra.mxu0 0.0
      %311 = vmatprep.mubr.f32.mxu0 0.0
      %312 = vmatmul.mubr.f32.gmra.mxu0 %v221
      %v313 = vpop.f32.mrf.mxu0
      %v314 = vadd.f32 0.0, %v313
      %v315 = vpop.f32.mrf.mxu0
      %316 = vdwg.mxu0
      %v317 = vld [vmem:[%s205] sm:$0xff]
      %v318 = vmul.f32 %v314, %v317
      %vm319 = vcmask 523264
      %v320 = vsel %vm319, %v318, 0.0
      %321 = vadd.xlane.f32.xlu0 %v320
      %v322 = vpop.xlane.xlu0 %321
      %v323 = vld [vmem:[%s3] sm:$0x7]
      %v325 = vsel %vm319, %v317, 0
      %v328 = vsel %vm319, %v323, 0
      %330 = vmatprep.subr.mxu0 0.0
      %331 = vmatpush1.xpose.msra.mxu0 0.0
      %332 = vmatprep.subr.mxu0 0.0
      %333 = vmatpush1.xpose.msra.mxu0 0.0
      %334 = vmatprep.subr.mxu0 0.0
      %335 = vmatpush1.xpose.msra.mxu0 0.0
      %336 = vmatprep.subr.mxu0 0.0
      %337 = vmatpush1.xpose.msra.mxu0 0.0
      %338 = vmatprep.subr.mxu0 0.0
      %339 = vmatpush1.xpose.msra.mxu0 0.0
      %340 = vmatprep.subr.mxu0 0.0
      %341 = vmatpush1.xpose.msra.mxu0 0.0
      %342 = vmatprep.subr.mxu0 0.0
      %343 = vmatpush1.xpose.msra.mxu0 0.0
      %344 = vmatprep.subr.mxu0 0.0
      %345 = vmatpush1.xpose.msra.mxu0 0.0
      %346 = vmatprep.subr.mxu0 0.0
      %347 = vmatpush1.xpose.msra.mxu0 0.0
      %348 = vmatprep.subr.mxu0 0.0
      %349 = vmatpush1.xpose.msra.mxu0 0.0
      %350 = vmatprep.subr.mxu0 0.0
      %351 = vmatpush1.xpose.msra.mxu0 0.0
      %352 = vmatprep.subr.mxu0 0.0
      %353 = vmatpush1.xpose.msra.mxu0 0.0
      %354 = vmatprep.subr.mxu0 0.0
      %355 = vmatpush1.xpose.msra.mxu0 0.0
      %356 = vmatprep.subr.mxu0 0.0
      %357 = vmatpush1.xpose.msra.mxu0 0.0
      %358 = vmatprep.subr.mxu0 0.0
      %359 = vmatpush1.xpose.msra.mxu0 0.0
      %360 = vmatprep.subr.mxu0 0.0
      %361 = vmatpush1.xpose.msra.mxu0 %v328
      %362 = vmatprep.subr.mxu0 0.0
      %363 = vmatpush2.xpose.msra.mxu0 0.0
      %364 = vmatprep.subr.mxu0 0.0
      %365 = vmatpush2.xpose.msra.mxu0 0.0
      %366 = vmatprep.subr.mxu0 0.0
      %367 = vmatpush2.xpose.msra.mxu0 0.0
      %368 = vmatprep.subr.mxu0 0.0
      %369 = vmatpush2.xpose.msra.mxu0 0.0
      %370 = vmatprep.subr.mxu0 0.0
      %371 = vmatpush2.xpose.msra.mxu0 0.0
      %372 = vmatprep.subr.mxu0 0.0
      %373 = vmatpush2.xpose.msra.mxu0 0.0
      %374 = vmatprep.subr.mxu0 0.0
      %375 = vmatpush2.xpose.msra.mxu0 0.0
      %376 = vmatprep.subr.mxu0 0.0
      %377 = vmatpush2.xpose.msra.mxu0 0.0
      %378 = vmatprep.subr.mxu0 0.0
      %379 = vmatpush2.xpose.msra.mxu0 0.0
      %380 = vmatprep.subr.mxu0 0.0
      %381 = vmatpush2.xpose.msra.mxu0 0.0
      %382 = vmatprep.subr.mxu0 0.0
      %383 = vmatpush2.xpose.msra.mxu0 0.0
      %384 = vmatprep.subr.mxu0 0.0
      %385 = vmatpush2.xpose.msra.mxu0 0.0
      %386 = vmatprep.subr.mxu0 0.0
      %387 = vmatpush2.xpose.msra.mxu0 0.0
      %388 = vmatprep.subr.mxu0 0.0
      %389 = vmatpush2.xpose.msra.mxu0 0.0
      %390 = vmatprep.subr.mxu0 0.0
      %391 = vmatpush2.xpose.msra.mxu0 0.0
      %392 = vmatprep.subr.mxu0 0.0
      %393 = vmatpush2.xpose.msra.mxu0 0.0
      %394 = vmatprep.mubr.f32.mxu0 0.0
      %395 = vmatmul.mubr.f32.gmra.mxu0 %v325
      %v396 = vpop.f32.mrf.mxu0
      %v397 = vadd.f32 0.0, %v396
      %v398 = vpop.f32.mrf.mxu0
      %399 = vdwg.mxu0
      %vm400 = vcmask 23552
      %v401 = vsel %vm400, %v397, -inf
      %402 = vmax.xlane.f32.xlu0 %v401
      %v403 = vpop.xlane.xlu0 %402
      %v404 = vmax.f32 %v322, %v403
      %v405 = vsub.f32 %v322, %v404
      %v406 = vmul.f32 %v405, 1.442695
      %v407 = vpow.pop %v406
      %v408 = vsub.f32 %v397, %v404
      %v409 = vmul.f32 %v408, 1.442695
      %v410 = vpow.pop %v409
      %v411 = vsel %vm400, %v410, 0.0
      %412 = vadd.xlane.f32.xlu0 %v411
      %v413 = vpop.xlane.xlu0 %412
      %v414 = vadd.f32 %v407, %v413
      %v415 = vsub.f32 %v404, %v322
      %v416 = vlog2.pop %v414
      %v417 = vmul.f32 %v416, 0.6931472
      %v418 = vadd.f32 %v415, %v417
      %vm419 = vcmask 7168
      %420 = vst.msk [vmem:[%s209] sm:$0xff] %vm419, %v418
      %p421 = scmp.lt.s32.totalorder %s15, 1
      %s422 = scalar_select %p421, %s15, 1
      %s423 = smul.addr %s422, 8
      %s424 = scalar_lea.vmem %s4, %s423
      // Predicated region
      $region37: #{reconstruction_softmax_loss.1} parent=35 // pred_check
        %p425 = pneg %p127
      $region38: #{reconstruction_softmax_loss.1} parent=35 // pred_check_branch
        %427 = sbr.rel (%p425) target = $region40
      $region39: #{reconstruction_softmax_loss.1} parent=35 // pred_region
        _
      $region40: #{reconstruction_softmax_loss.1} parent=35 // pred_fallthru
        _
    $region36: #{reconstruction_softmax_loss.1} parent=5 // pred_fallthru
      _
    %p428 = scmp.le.s32.totalorder 2, %s10
    // Predicated region
    $region41: #{reconstruction_softmax_loss.1} parent=5 // pred_check
      %p429 = pneg %p428
    $region42: #{reconstruction_softmax_loss.1} parent=5 // pred_check_branch
      %431 = sbr.rel (%p429) target = $region44
    $region43: #{reconstruction_softmax_loss.1} parent=5 // pred_region
      %s432 = ssub.s32 %s10, 2
      // Predicated region
      $region45: #{reconstruction_softmax_loss.1} parent=43 // pred_check
        %p433 = pneg %p133
      $region46: #{reconstruction_softmax_loss.1} parent=43 // pred_check_branch
        %435 = sbr.rel (%p433) target = $region48
      $region47: #{reconstruction_softmax_loss.1} parent=43 // pred_region
        %p436 = scmp.lt.s32.totalorder %s16, 1
        %s437 = scalar_select %p436, %s16, 1
        %s438 = smul.addr %s437, 8
        %s439 = scalar_lea.vmem %s4, %s438
      $region48: #{reconstruction_softmax_loss.1} parent=43 // pred_fallthru
        _
    $region44: #{reconstruction_softmax_loss.1} parent=5 // pred_fallthru
      _
  $region6: #{reconstruction_softmax_loss.1} parent=0 // loop_footer
    %s14 = sadd.s32 1, %s10
  $region7: #{reconstruction_softmax_loss.1} parent=0 // loop_footer_branch
    %9 = sbr.rel target = $region3
  $region8: #{reconstruction_softmax_loss.1} parent=0 // loop_exit
    _

</llo_original>
